<compile_context>
chip_gen: v6e
topology: v6e:2x2x1
jax: 0.10.0
libtpu: 0.0.40
codegen_flags: <defaults>
</compile_context>

<pallas_src>
import jax
import jax.numpy as jnp
import numpy as np
from jax import lax
from jax.experimental import pallas as pl
from jax.experimental.pallas import tpu as pltpu


def attention_pooling_kernel(f_ref, wh_ref, h_ref, sbr_ref, sbc_ref, o_ref):
    # f tile for TM query rows; mask/softmax math is always f32.
    f = f_ref[...].astype(jnp.float32)          # (TM, B, f_dim)
    wh = wh_ref[...]                            # (B, f_dim)  f32, precomputed outside
    sb_row = sbr_ref[...]                       # (TM, 1) int32
    sb_col = sbc_ref[...]                       # (1, B)  int32

    tm, b = f.shape[0], f.shape[1]

    # scores[t, j] = <f[t, j, :], Wh[j, :]>  -> (TM, B); VPU multiply + lane reduce.
    scores = jnp.sum(f * wh[None, :, :], axis=-1)

    # Masks: same sub-batch keeps the score (self forced to -1000, as in the
    # reference); other sub-batches are excluded from the softmax entirely.
    same = sb_row == sb_col                                         # (TM, B)
    r0 = pl.program_id(0) * tm
    row = r0 + lax.broadcasted_iota(jnp.int32, (tm, b), 0)
    col = lax.broadcasted_iota(jnp.int32, (tm, b), 1)
    is_self = row == col
    masked = jnp.where(is_self, -1000.0, jnp.where(same, scores, -1e30))

    # Row softmax (unnormalized); normalization is folded in after the matmul.
    m = jnp.max(masked, axis=-1, keepdims=True)                     # (TM, 1)
    e = jnp.exp(masked - m)                                         # (TM, B)
    denom = jnp.sum(e, axis=-1, keepdims=True)                      # (TM, 1)

    # Pooling matmul on the MXU (bf16 feed when h is bf16), f32 accumulation.
    h = h_ref[...]                                                  # (B, HP)
    s = jnp.dot(e.astype(h.dtype), h, preferred_element_type=jnp.float32)  # (TM, HP)
    inv = pl.reciprocal(denom, approx=False)
    s = s * inv

    # Sub-batches of size 1 are skipped in the reference (rows stay zero); also
    # zero any padded rows of a partial last tile (keeps garbage/NaN out of HBM).
    counts = jnp.sum(same.astype(jnp.float32), axis=-1, keepdims=True)   # (TM, 1)
    row_valid = row[:, :1] < b                                           # (TM, 1)
    s = jnp.where((counts > 1.0) & row_valid, s, 0.0)

    o_ref[...] = s.astype(o_ref.dtype)


def _vmem_capacity_bytes():
    try:
        return int(pltpu.get_tpu_info().vmem_capacity_bytes)
    except Exception:
        return 64 * 1024 * 1024  # conservative (v7x per-core VMEM)


def attention_pooling(f, h, W, bias, sb_id, *, tm=None):
    B, h_dim = h.shape
    f_dim = W.shape[0]
    assert f.shape == (B, B, f_dim)

    # Precompute Wh = h @ W.T + bias in plain JAX (tiny matmul; removes per-step
    # transpose + matmul from the kernel).
    wh = (h.astype(jnp.float32) @ W.astype(jnp.float32).T
          + bias.astype(jnp.float32).reshape(1, f_dim))             # (B, f_dim) f32

    # Lane-dense output: pad h_dim up to a multiple of 128 so output stores are
    # unmasked full-lane vst; slice the padding off afterwards.
    hp = ((h_dim + 127) // 128) * 128
    h_p = jnp.pad(h, ((0, 0), (0, hp - h_dim))) if hp != h_dim else h

    sb_row = sb_id.reshape(B, 1).astype(jnp.int32)
    sb_col = sb_id.reshape(1, B).astype(jnp.int32)

    # Tile-size / VMEM-budget selection (generation-aware: 64 MiB VMEM on v7x,
    # 128 MiB on v5e/v6e).
    cap = _vmem_capacity_bytes()
    vmem_limit = int(max(32 << 20, min(cap * 3 // 4, 96 << 20)))
    f_row_bytes = B * f_dim * jnp.dtype(f.dtype).itemsize
    if tm is None:
        f_budget = vmem_limit // 3                 # double-buffered f stream share
        tm = max(1, f_budget // (2 * f_row_bytes))
        tm = B if tm >= B else max(8, (tm // 8) * 8)
    tm = int(min(tm, B))
    grid = (pl.cdiv(B, tm),)

    itemsize = jnp.dtype(f.dtype).itemsize
    cost = pl.CostEstimate(
        flops=2 * B * B * f_dim + 2 * B * B * hp,
        transcendentals=B * B,
        bytes_accessed=int(f.size * itemsize
                           + h_p.size * jnp.dtype(h_p.dtype).itemsize
                           + wh.size * 4
                           + B * hp * jnp.dtype(h.dtype).itemsize),
    )

    out_p = pl.pallas_call(
        attention_pooling_kernel,
        out_shape=jax.ShapeDtypeStruct((B, hp), h.dtype),
        grid=grid,
        in_specs=[
            pl.BlockSpec((tm, B, f_dim), lambda i: (i, 0, 0)),   # f (dominant, double-buffered)
            pl.BlockSpec((B, f_dim), lambda i: (0, 0)),          # Wh (precomputed, resident)
            pl.BlockSpec((B, hp), lambda i: (0, 0)),             # h  (padded, lane-dense)
            pl.BlockSpec((tm, 1), lambda i: (i, 0)),             # sub-batch id, row view
            pl.BlockSpec((1, B), lambda i: (0, 0)),              # sub-batch id, col view
        ],
        out_specs=pl.BlockSpec((tm, hp), lambda i: (i, 0)),
        compiler_params=pltpu.CompilerParams(
            dimension_semantics=("parallel",),
            vmem_limit_bytes=vmem_limit,
        ),
        cost_estimate=cost,
    )(f, wh, h_p, sb_row, sb_col)

    return out_p[:, :h_dim] if hp != h_dim else out_p


def reference_numpy(f, h, W, bias, sub_batches):
    f = np.asarray(f, np.float32); h = np.asarray(h, np.float32)
    W = np.asarray(W, np.float32); bias = np.asarray(bias, np.float32)
    Wh = h @ W.T + bias
    S = np.zeros_like(h)
    for (s, e) in sub_batches:
        N = e - s
        if N == 1:
            continue
        for ii in range(s, e):
            sigma = np.sum(f[ii, s:e] * Wh[s:e], axis=-1)
            sigma[ii - s] = -1000.0
            a = np.exp(sigma - sigma.max())
            a = a / a.sum()
            S[ii] = a @ h[s:e]
    return S


if __name__ == "__main__":
    B, h_dim, f_dim = 16, 32, 32
    sub_batches = [(0, 3), (3, 4), (4, 9), (9, 16)]   # includes an N == 1 sub-batch

    key = jax.random.PRNGKey(0)
    kf, kh, kw, kb = jax.random.split(key, 4)
    f = jax.random.normal(kf, (B, B, f_dim), dtype=jnp.float32)
    h = jax.random.normal(kh, (B, h_dim), dtype=jnp.float32)
    W = jax.random.normal(kw, (f_dim, h_dim), dtype=jnp.float32) * 0.1
    bias = jax.random.normal(kb, (f_dim,), dtype=jnp.float32) * 0.1

    sb_np = np.zeros((B,), dtype=np.int32)
    for idx, (s, e) in enumerate(sub_batches):
        sb_np[s:e] = idx
    sb_id = jnp.asarray(sb_np)

    ref = reference_numpy(f, h, W, bias, sub_batches)

    # f32 path, tm=8 -> 2 grid steps (exercises the row-tiled pipeline).
    out = attention_pooling(f, h, W, bias, sb_id, tm=8)
    out = jax.block_until_ready(out)
    np.testing.assert_allclose(np.asarray(out), ref, rtol=1e-5, atol=1e-5)

    # bf16 storage of f/h (HBM-bandwidth win); compute stays f32 inside the kernel.
    out_bf16 = attention_pooling(f.astype(jnp.bfloat16), h.astype(jnp.bfloat16),
                                 W, bias, sb_id, tm=8)
    out_bf16 = jax.block_until_ready(out_bf16)
    np.testing.assert_allclose(np.asarray(out_bf16.astype(jnp.float32)), ref,
                               rtol=1e-1, atol=1e-1)

    print("KERNEL_OK")
</pallas_src>

<mosaic_0001>
module attributes {stable_mosaic.version = 11 : i64} {
  func.func @attention_pooling_kernel(%arg0: i32, %arg1: memref<8x16x32xf32, #tpu.memory_space<vmem>>, %arg2: memref<16x32xf32, #tpu.memory_space<vmem>>, %arg3: memref<16x128xf32, #tpu.memory_space<vmem>>, %arg4: memref<8x1xi32, #tpu.memory_space<vmem>>, %arg5: memref<1x16xi32, #tpu.memory_space<vmem>>, %arg6: memref<8x128xf32, #tpu.memory_space<vmem>>) attributes {dimension_semantics = [#tpu.dimension_semantics<parallel>], iteration_bounds = array<i64: 2>, scalar_prefetch = 0 : i64, scratch_operands = 0 : i64, tpu.core_type = #tpu.core_type<tc>, window_params = [{transform_indices = @transform_0, window_bounds = array<i64: 8, 16, 32>}, {pipeline_mode = #tpu.pipeline_mode<synchronous>, transform_indices = @transform_1, window_bounds = array<i64: 16, 32>}, {pipeline_mode = #tpu.pipeline_mode<synchronous>, transform_indices = @transform_2, window_bounds = array<i64: 16, 128>}, {transform_indices = @transform_3, window_bounds = array<i64: 8, 1>}, {pipeline_mode = #tpu.pipeline_mode<synchronous>, transform_indices = @transform_4, window_bounds = array<i64: 1, 16>}, {transform_indices = @transform_5, window_bounds = array<i64: 8, 128>}]} {
    %c0 = arith.constant 0 : index
    %c0_0 = arith.constant 0 : index
    %c0_1 = arith.constant 0 : index
    %0 = vector.load %arg1[%c0, %c0_0, %c0_1] : memref<8x16x32xf32, #tpu.memory_space<vmem>>, vector<8x16x32xf32>
    %c0_2 = arith.constant 0 : index
    %c0_3 = arith.constant 0 : index
    %1 = vector.load %arg2[%c0_2, %c0_3] : memref<16x32xf32, #tpu.memory_space<vmem>>, vector<16x32xf32>
    %c0_4 = arith.constant 0 : index
    %c0_5 = arith.constant 0 : index
    %2 = vector.load %arg4[%c0_4, %c0_5] : memref<8x1xi32, #tpu.memory_space<vmem>>, vector<8x1xi32>
    %c0_6 = arith.constant 0 : index
    %c0_7 = arith.constant 0 : index
    %3 = vector.load %arg5[%c0_6, %c0_7] : memref<1x16xi32, #tpu.memory_space<vmem>>, vector<1x16xi32>
    %4 = vector.shape_cast %1 : vector<16x32xf32> to vector<1x16x32xf32>
    %5 = vector.broadcast %4 : vector<1x16x32xf32> to vector<8x16x32xf32>
    %6 = arith.mulf %0, %5 : vector<8x16x32xf32>
    %cst = arith.constant dense<0.000000e+00> : vector<8x16xf32>
    %7 = vector.multi_reduction <add>, %6, %cst [2] : vector<8x16x32xf32> to vector<8x16xf32>
    %8 = vector.broadcast %2 : vector<8x1xi32> to vector<8x16xi32>
    %9 = vector.broadcast %3 : vector<1x16xi32> to vector<8x16xi32>
    %10 = arith.cmpi eq, %8, %9 : vector<8x16xi32>
    %c8_i32 = arith.constant 8 : i32
    %11 = arith.muli %arg0, %c8_i32 : i32
    %12 = tpu.iota {dimensions = array<i32: 0>} : vector<8x16xi32>
    %13 = vector.broadcast %11 : i32 to vector<8x16xi32>
    %14 = arith.addi %13, %12 : vector<8x16xi32>
    %15 = tpu.iota {dimensions = array<i32: 1>} : vector<8x16xi32>
    %16 = arith.cmpi eq, %14, %15 : vector<8x16xi32>
    %cst_8 = arith.constant -1.000000e+30 : f32
    %17 = vector.broadcast %cst_8 : f32 to vector<8x16xf32>
    %18 = arith.select %10, %7, %17 : vector<8x16xi1>, vector<8x16xf32>
    %cst_9 = arith.constant -1.000000e+03 : f32
    %19 = vector.broadcast %cst_9 : f32 to vector<8x16xf32>
    %20 = arith.select %16, %19, %18 : vector<8x16xi1>, vector<8x16xf32>
    %cst_10 = arith.constant dense<0xFF800000> : vector<8xf32>
    %21 = vector.multi_reduction <maximumf>, %20, %cst_10 [1] : vector<8x16xf32> to vector<8xf32>
    %22 = vector.shape_cast %21 : vector<8xf32> to vector<8x1xf32>
    %23 = vector.broadcast %22 : vector<8x1xf32> to vector<8x16xf32>
    %24 = arith.subf %20, %23 : vector<8x16xf32>
    %25 = math.exp %24 : vector<8x16xf32>
    %cst_11 = arith.constant dense<0.000000e+00> : vector<8xf32>
    %26 = vector.multi_reduction <add>, %25, %cst_11 [1] : vector<8x16xf32> to vector<8xf32>
    %27 = vector.shape_cast %26 : vector<8xf32> to vector<8x1xf32>
    %c0_12 = arith.constant 0 : index
    %c0_13 = arith.constant 0 : index
    %28 = vector.load %arg3[%c0_12, %c0_13] : memref<16x128xf32, #tpu.memory_space<vmem>>, vector<16x128xf32>
    %cst_14 = arith.constant dense<0.000000e+00> : vector<8x128xf32>
    %29 = tpu.matmul %25, %28, %cst_14 {dimension_numbers = #tpu.dot_dimension_numbers<[1], [0], [0], [1], [0, 0, 1, 1], [], []>} : vector<8x16xf32>, vector<16x128xf32>, vector<8x128xf32> -> vector<8x128xf32>
    %30 = tpu.reciprocal %27 : vector<8x1xf32> -> vector<8x1xf32>
    %31 = vector.broadcast %30 : vector<8x1xf32> to vector<8x128xf32>
    %32 = arith.mulf %29, %31 : vector<8x128xf32>
    %33 = arith.extui %10 : vector<8x16xi1> to vector<8x16xi32>
    %34 = arith.sitofp %33 : vector<8x16xi32> to vector<8x16xf32>
    %cst_15 = arith.constant dense<0.000000e+00> : vector<8xf32>
    %35 = vector.multi_reduction <add>, %34, %cst_15 [1] : vector<8x16xf32> to vector<8xf32>
    %36 = vector.shape_cast %35 : vector<8xf32> to vector<8x1xf32>
    %37 = vector.extract_strided_slice %14 {offsets = [0, 0], sizes = [8, 1], strides = [1, 1]} : vector<8x16xi32> to vector<8x1xi32>
    %c16_i32 = arith.constant 16 : i32
    %38 = vector.broadcast %c16_i32 : i32 to vector<8x1xi32>
    %39 = arith.cmpi slt, %37, %38 : vector<8x1xi32>
    %cst_16 = arith.constant 1.000000e+00 : f32
    %40 = vector.broadcast %cst_16 : f32 to vector<8x1xf32>
    %41 = arith.cmpf ogt, %36, %40 : vector<8x1xf32>
    %42 = arith.andi %41, %39 : vector<8x1xi1>
    %cst_17 = arith.constant 0.000000e+00 : f32
    %43 = vector.shape_cast %42 : vector<8x1xi1> to vector<8x1xi1>
    %44 = vector.broadcast %43 : vector<8x1xi1> to vector<8x128xi1>
    %45 = vector.broadcast %cst_17 : f32 to vector<8x128xf32>
    %46 = arith.select %44, %32, %45 : vector<8x128xi1>, vector<8x128xf32>
    %c0_18 = arith.constant 0 : index
    %c0_19 = arith.constant 0 : index
    %47 = vector.load %arg6[%c0_18, %c0_19] : memref<8x128xf32, #tpu.memory_space<vmem>>, vector<8x128xf32>
    tpu.vector_store %arg6[%c0_18, %c0_19], %46 {strides = array<i32>} : memref<8x128xf32, #tpu.memory_space<vmem>>, vector<8x128xf32>,
    return
  }
  func.func @transform_0(%arg0: i32) -> (i32, i32, i32) {
    %c0_i32 = arith.constant 0 : i32
    %c0_i32_0 = arith.constant 0 : i32
    %c0_i32_1 = arith.constant 0 : i32
    return %arg0, %c0_i32, %c0_i32_0 : i32, i32, i32
  }
  func.func @transform_1(%arg0: i32) -> (i32, i32) {
    %c0_i32 = arith.constant 0 : i32
    %c0_i32_0 = arith.constant 0 : i32
    %c0_i32_1 = arith.constant 0 : i32
    return %c0_i32, %c0_i32_0 : i32, i32
  }
  func.func @transform_2(%arg0: i32) -> (i32, i32) {
    %c0_i32 = arith.constant 0 : i32
    %c0_i32_0 = arith.constant 0 : i32
    %c0_i32_1 = arith.constant 0 : i32
    return %c0_i32, %c0_i32_0 : i32, i32
  }
  func.func @transform_3(%arg0: i32) -> (i32, i32) {
    %c0_i32 = arith.constant 0 : i32
    %c0_i32_0 = arith.constant 0 : i32
    return %arg0, %c0_i32 : i32, i32
  }
  func.func @transform_4(%arg0: i32) -> (i32, i32) {
    %c0_i32 = arith.constant 0 : i32
    %c0_i32_0 = arith.constant 0 : i32
    %c0_i32_1 = arith.constant 0 : i32
    return %c0_i32, %c0_i32_0 : i32, i32
  }
  func.func @transform_5(%arg0: i32) -> (i32, i32) {
    %c0_i32 = arith.constant 0 : i32
    %c0_i32_0 = arith.constant 0 : i32
    return %arg0, %c0_i32 : i32, i32
  }
}

</mosaic_0001>

<llo_original>
// kernel: tpu_custom_call.1
$region0: #{tpu_custom_call.1}
  #allocation0 [shape = 'u32[]', space=smem, size = 0x4, offset = 0x4, fixed_abs, tag = 'smem constant byte address 0x4 - core index']
  #allocation1 [shape = 'u32[144,128]{1,0:T(1,128)}', space=vmem, size = 0x12000, scoped, tag = 'internal scratch']
  %s0 = inlined_call_operand.hbm [shape: f32[16,16,32], index: 0, kind: input, shape index: {}]
  %s1 = inlined_call_operand.vmem [shape: f32[16,32], index: 1, kind: input, shape index: {}]
  %s2 = inlined_call_operand.hbm [shape: f32[16,128], index: 2, kind: input, shape index: {}]
  %s3 = inlined_call_operand.vmem [shape: s32[16,1], index: 3, kind: input, shape index: {}]
  %s4 = inlined_call_operand.vmem [shape: s32[1,16], index: 4, kind: input, shape index: {}]
  %s5 = inlined_call_operand.hbm [shape: f32[16,128], index: 5, kind: output, shape index: {}]
  %s6 = sld [smem:[#allocation0]]
  $region61: #{tpu_custom_call.1} parent=0
    _
  %s8 = ssub.s32 1, %s6
  %s9 = scalar_select 0, %s8, %s6
  $region1: #{tpu_custom_call.1} parent=0
    #allocation2 [shape = 'u8[131072]{0}', space=vmem, size = 0x20000, scoped, tag = 'input window, operand 0']
    #allocation3 [shape = 's32[2]{0}', space=sflag, size = 0x8, scoped, tag = 'scoped memory for tpu_custom_call.1']
    #allocation4 [shape = 's32[2]{0}', space=sflag, size = 0x8, scoped, tag = 'scoped memory for tpu_custom_call.1']
    #allocation5 [shape = 'u8[8192]{0}', space=vmem, size = 0x2000, scoped, tag = 'input window, operand 2, single buffered']
    #allocation6 [shape = 's32[1]{0}', space=sflag, size = 0x4, scoped, tag = 'scoped memory for tpu_custom_call.1']
    #allocation7 [shape = 'u8[8192]{0}', space=vmem, size = 0x2000, scoped, tag = 'output window, operand 0']
    %10 = vsyncpa [#allocation3], 0
    %s11 = scalar_lea.sflag [#allocation3], 1
    %12 = vsyncpa %s11, 0
    %13 = vsyncpa [#allocation6], 0
    %14 = vsyncpa [#allocation4], 0
    %s15 = scalar_lea.sflag [#allocation4], 1
    %16 = vsyncpa %s15, 0
    loop: start=0, step=1, limit=4
    $region2: #{tpu_custom_call.1} parent=1 // loop_pre_header
      _
    $region3: #{tpu_custom_call.1} parent=1 // loop_header
      %s18 = sphi 0, %s22
      %p19 = scmp.ge.s32.totalorder %s18, 4
      %s28 = sphi 0, %s30
      %s31 = sphi 0, %s28
      %s32 = sphi 0, %s31
      %s48 = sphi 0, %s32
      %s52 = sphi 0, %s52
      %s54 = sphi 0, %s52
      %s55 = sphi 0, %s54
      %s69 = sphi 0, %s55
      %s73 = sphi 0, %s73
      %s75 = sphi 0, %s73
      %s76 = sphi 0, %s75
      %s90 = sphi 0, %s76
      %s96 = sphi 0, %s98
      %s99 = sphi 0, %s96
      %s100 = sphi 0, %s99
      %s116 = sphi 0, %s100
      %s120 = sphi 0, %s120
      %s122 = sphi 0, %s120
      %s123 = sphi 0, %s122
      %s137 = sphi 0, %s123
      %s143 = sphi 0, %s145
      %s146 = sphi 0, %s143
      %s147 = sphi 0, %s146
      %s163 = sphi 0, %s147
    $region4: #{tpu_custom_call.1} parent=1 // loop_header_branch
      %21 = sbr.rel (%p19) target = $region8
    $region5: #{tpu_custom_call.1} parent=1 // loop_body
      %s23 = ssub.s32 %s18, 1
      %s24 = ssub.s32 %s18, 2
      %s25 = sadd.s32 %s18, 1
      %s26 = ssub.s32 %s18, %s25
      %p27 = scmp.eq.s32.totalorder %s26, 0
      %s29 = sadd.s32 %s28, 1
      %s30 = scalar_select %p27, %s28, %s29
      %p33 = pneg %p27
      %p34 = scmp.eq.s32.totalorder %s18, 1
      %p35 = por %p33, %p34
      %p36 = scmp.ne.s32.totalorder %s28, %s31
      %p37 = scmp.eq.s32.totalorder %s18, 0
      %p38 = por %p36, %p37
      %p39 = scmp.ne.s32.totalorder %s28, %s31
      %p40 = scmp.eq.s32.totalorder %s23, 1
      %p41 = por %p39, %p40
      %p42 = scmp.ne.s32.totalorder %s31, %s32
      %p43 = scmp.eq.s32.totalorder %s23, 0
      %p44 = por %p42, %p43
      %p45 = scmp.ne.s32.totalorder %s31, %s32
      %p46 = scmp.eq.s32.totalorder %s24, 1
      %p47 = por %p45, %p46
      %p49 = scmp.ne.s32.totalorder %s32, %s48
      %p50 = scmp.eq.s32.totalorder %s24, 0
      %p51 = por %p49, %p50
      %s53 = sadd.s32 %s52, 1
      %p56 = scmp.eq.s32.totalorder %s18, 1
      %p57 = scmp.ne.s32.totalorder %s52, %s54
      %p58 = scmp.eq.s32.totalorder %s18, 0
      %p59 = por %p57, %p58
      %p60 = scmp.ne.s32.totalorder %s52, %s54
      %p61 = scmp.eq.s32.totalorder %s23, 1
      %p62 = por %p60, %p61
      %p63 = scmp.ne.s32.totalorder %s54, %s55
      %p64 = scmp.eq.s32.totalorder %s23, 0
      %p65 = por %p63, %p64
      %p66 = scmp.ne.s32.totalorder %s54, %s55
      %p67 = scmp.eq.s32.totalorder %s24, 1
      %p68 = por %p66, %p67
      %p70 = scmp.ne.s32.totalorder %s55, %s69
      %p71 = scmp.eq.s32.totalorder %s24, 0
      %p72 = por %p70, %p71
      %s74 = sadd.s32 %s73, 1
      %p77 = scmp.eq.s32.totalorder %s18, 1
      %p78 = scmp.ne.s32.totalorder %s73, %s75
      %p79 = scmp.eq.s32.totalorder %s18, 0
      %p80 = por %p78, %p79
      %p81 = scmp.ne.s32.totalorder %s73, %s75
      %p82 = scmp.eq.s32.totalorder %s23, 1
      %p83 = por %p81, %p82
      %p84 = scmp.ne.s32.totalorder %s75, %s76
      %p85 = scmp.eq.s32.totalorder %s23, 0
      %p86 = por %p84, %p85
      %p87 = scmp.ne.s32.totalorder %s75, %s76
      %p88 = scmp.eq.s32.totalorder %s24, 1
      %p89 = por %p87, %p88
      %p91 = scmp.ne.s32.totalorder %s76, %s90
      %p92 = scmp.eq.s32.totalorder %s24, 0
      %p93 = por %p91, %p92
      %s94 = ssub.s32 %s18, %s25
      %p95 = scmp.eq.s32.totalorder %s94, 0
      %s97 = sadd.s32 %s96, 1
      %s98 = scalar_select %p95, %s96, %s97
      %p101 = pneg %p95
      %p102 = scmp.eq.s32.totalorder %s18, 1
      %p103 = por %p101, %p102
      %p104 = scmp.ne.s32.totalorder %s96, %s99
      %p105 = scmp.eq.s32.totalorder %s18, 0
      %p106 = por %p104, %p105
      %p107 = scmp.ne.s32.totalorder %s96, %s99
      %p108 = scmp.eq.s32.totalorder %s23, 1
      %p109 = por %p107, %p108
      %p110 = scmp.ne.s32.totalorder %s99, %s100
      %p111 = scmp.eq.s32.totalorder %s23, 0
      %p112 = por %p110, %p111
      %p113 = scmp.ne.s32.totalorder %s99, %s100
      %p114 = scmp.eq.s32.totalorder %s24, 1
      %p115 = por %p113, %p114
      %p117 = scmp.ne.s32.totalorder %s100, %s116
      %p118 = scmp.eq.s32.totalorder %s24, 0
      %p119 = por %p117, %p118
      %s121 = sadd.s32 %s120, 1
      %p124 = scmp.eq.s32.totalorder %s18, 1
      %p125 = scmp.ne.s32.totalorder %s120, %s122
      %p126 = scmp.eq.s32.totalorder %s18, 0
      %p127 = por %p125, %p126
      %p128 = scmp.ne.s32.totalorder %s120, %s122
      %p129 = scmp.eq.s32.totalorder %s23, 1
      %p130 = por %p128, %p129
      %p131 = scmp.ne.s32.totalorder %s122, %s123
      %p132 = scmp.eq.s32.totalorder %s23, 0
      %p133 = por %p131, %p132
      %p134 = scmp.ne.s32.totalorder %s122, %s123
      %p135 = scmp.eq.s32.totalorder %s24, 1
      %p136 = por %p134, %p135
      %p138 = scmp.ne.s32.totalorder %s123, %s137
      %p139 = scmp.eq.s32.totalorder %s24, 0
      %p140 = por %p138, %p139
      %s141 = ssub.s32 %s18, %s25
      %p142 = scmp.eq.s32.totalorder %s141, 0
      %s144 = sadd.s32 %s143, 1
      %s145 = scalar_select %p142, %s143, %s144
      %p148 = pneg %p142
      %p149 = scmp.eq.s32.totalorder %s18, 1
      %p150 = por %p148, %p149
      %p151 = scmp.ne.s32.totalorder %s143, %s146
      %p152 = scmp.eq.s32.totalorder %s18, 0
      %p153 = por %p151, %p152
      %p154 = scmp.ne.s32.totalorder %s143, %s146
      %p155 = scmp.eq.s32.totalorder %s23, 1
      %p156 = por %p154, %p155
      %p157 = scmp.ne.s32.totalorder %s146, %s147
      %p158 = scmp.eq.s32.totalorder %s23, 0
      %p159 = por %p157, %p158
      %p160 = scmp.ne.s32.totalorder %s146, %s147
      %p161 = scmp.eq.s32.totalorder %s24, 1
      %p162 = por %p160, %p161
      %p164 = scmp.ne.s32.totalorder %s147, %s163
      %p165 = scmp.eq.s32.totalorder %s24, 0
      %p166 = por %p164, %p165
      %p167 = scmp.le.s32.totalorder 1, %s18
      %p168 = scmp.lt.s32.totalorder %s18, 3
      %p169 = pnand %p167, %p168
      %p170 = pneg %p169
      // Predicated region
      $region9: #{tpu_custom_call.1} parent=5 // pred_check
        _
      $region10: #{tpu_custom_call.1} parent=5 // pred_check_branch
        %172 = sbr.rel (%p169) target = $region12
      $region11: #{tpu_custom_call.1} parent=5 // pred_region
        %s173 = ssub.s32 %s18, 1
        // Predicated region
        $region13: #{tpu_custom_call.1} parent=11 // pred_check
          %p174 = pneg %p65
        $region14: #{tpu_custom_call.1} parent=11 // pred_check_branch
          %176 = sbr.rel (%p174) target = $region16
        $region15: #{tpu_custom_call.1} parent=11 // pred_region
          _
        $region16: #{tpu_custom_call.1} parent=11 // pred_fallthru
          _
        // Predicated region
        $region17: #{tpu_custom_call.1} parent=11 // pred_check
          %p177 = pneg %p86
        $region18: #{tpu_custom_call.1} parent=11 // pred_check_branch
          %179 = sbr.rel (%p177) target = $region20
        $region19: #{tpu_custom_call.1} parent=11 // pred_region
          %s181 = ssub.s32 256, 256
          %182 = vsyncadd [#allocation6], %s181
          %s183 = sshll.u32 [#allocation5], 4
          %s184 = int_to_ptr.vmem [resolvable:$true] %s183
          %189 = dma.hbm_to_vmem [thread:$0]  %s2, 256, %s184, [#allocation6], 128, 128, 8
        $region20: #{tpu_custom_call.1} parent=11 // pred_fallthru
          _
        // Predicated region
        $region21: #{tpu_custom_call.1} parent=11 // pred_check
          %p190 = pneg %p133
        $region22: #{tpu_custom_call.1} parent=11 // pred_check_branch
          %192 = sbr.rel (%p190) target = $region24
        $region23: #{tpu_custom_call.1} parent=11 // pred_region
          _
        $region24: #{tpu_custom_call.1} parent=11 // pred_fallthru
          _
      $region12: #{tpu_custom_call.1} parent=5 // pred_fallthru
        _
      %p193 = scmp.lt.s32.totalorder %s18, 2
      // Predicated region
      $region25: #{tpu_custom_call.1} parent=5 // pred_check
        %p194 = pneg %p193
      $region26: #{tpu_custom_call.1} parent=5 // pred_check_branch
        %196 = sbr.rel (%p194) target = $region28
      $region27: #{tpu_custom_call.1} parent=5 // pred_region
        // Predicated region
        $region29: #{tpu_custom_call.1} parent=27 // pred_check
          %p197 = pneg %p38
        $region30: #{tpu_custom_call.1} parent=27 // pred_check_branch
          %199 = sbr.rel (%p197) target = $region32
        $region31: #{tpu_custom_call.1} parent=27 // pred_region
          %s200 = sand.u32 %s28, 1
          %s201 = scalar_lea.sflag [#allocation3], %s200
          %s202 = sand.u32 %s28, 1
          %s203 = smul.addr %s202, 128
          %s204 = scalar_lea.vmem [#allocation2], %s203
          %s205 = smul.u32 8, %s18
          %s207 = ssub.s32 2048, 2048
          %208 = vsyncadd %s201, %s207
          %s209 = smul.addr %s205, 2
          %s210 = smul.addr %s209, 128
          %s211 = scalar_lea.hbm %s0, %s210
          %s212 = sshll.u32 %s204, 4
          %s213 = int_to_ptr.vmem [resolvable:$true] %s212
          %218 = dma.hbm_to_vmem [thread:$0]  %s211, 2048, %s213, %s201, 128, 128, 8
        $region32: #{tpu_custom_call.1} parent=27 // pred_fallthru
          _
        // Predicated region
        $region33: #{tpu_custom_call.1} parent=27 // pred_check
          %p219 = pneg %p106
        $region34: #{tpu_custom_call.1} parent=27 // pred_check_branch
          %221 = sbr.rel (%p219) target = $region36
        $region35: #{tpu_custom_call.1} parent=27 // pred_region
          %p222 = scmp.lt.s32.totalorder %s18, 1
          %s223 = scalar_select %p222, %s18, 1
          %s224 = smul.addr %s223, 8
          %s225 = scalar_lea.vmem %s3, %s224
        $region36: #{tpu_custom_call.1} parent=27 // pred_fallthru
          _
      $region28: #{tpu_custom_call.1} parent=5 // pred_fallthru
        _
      %p226 = scmp.le.s32.totalorder 1, %s18
      %p227 = scmp.lt.s32.totalorder %s18, 3
      %p228 = pnand %p226, %p227
      %p229 = pneg %p228
      // Predicated region
      $region37: #{tpu_custom_call.1} parent=5 // pred_check
        _
      $region38: #{tpu_custom_call.1} parent=5 // pred_check_branch
        %231 = sbr.rel (%p228) target = $region40
      $region39: #{tpu_custom_call.1} parent=5 // pred_region
        %s232 = ssub.s32 %s18, 1
        %s233 = sand.u32 %s31, 1
        %s234 = scalar_lea.sflag [#allocation3], %s233
        %s235 = sand.u32 %s31, 1
        %s236 = smul.addr %s235, 128
        %s237 = scalar_lea.vmem [#allocation2], %s236
        // Predicated region
        $region41: #{tpu_custom_call.1} parent=39 // pred_check
          %p238 = pneg %p44
        $region42: #{tpu_custom_call.1} parent=39 // pred_check_branch
          %240 = sbr.rel (%p238) target = $region44
        $region43: #{tpu_custom_call.1} parent=39 // pred_region
          %241 = dma.done %s234, 2048
        $region44: #{tpu_custom_call.1} parent=39 // pred_fallthru
          _
        // Predicated region
        $region45: #{tpu_custom_call.1} parent=39 // pred_check
          %p242 = pneg %p86
        $region46: #{tpu_custom_call.1} parent=39 // pred_check_branch
          %244 = sbr.rel (%p242) target = $region48
        $region47: #{tpu_custom_call.1} parent=39 // pred_region
          %245 = dma.done [#allocation6], 256
        $region48: #{tpu_custom_call.1} parent=39 // pred_fallthru
          _
        %s246 = sand.u32 %s31, 1
        %s247 = scalar_lea.sflag [#allocation3], %s246
        %s248 = sand.u32 %s31, 1
        %s249 = smul.addr %s248, 128
        %s250 = scalar_lea.vmem [#allocation2], %s249
        %p251 = pneg %p44
        %p252 = pneg %p41
        %p253 = pneg %p65
        %p254 = pneg %p62
        %p255 = pneg %p86
        %p256 = pneg %p83
        %p257 = scmp.lt.s32.totalorder %s23, 1
        %s258 = scalar_select %p257, %s23, 1
        %s259 = smul.addr %s258, 8
        %s260 = scalar_lea.vmem %s3, %s259
        %p261 = pneg %p112
        %p262 = pneg %p109
        %p263 = pneg %p133
        %p264 = pneg %p130
        %p265 = pneg %p159
        %p266 = pneg %p156
        %s267 = sand.u32 %s146, 1
        %s268 = scalar_lea.sflag [#allocation4], %s267
        %s269 = sand.u32 %s146, 1
        %s270 = smul.addr %s269, 8
        %s271 = scalar_lea.vmem [#allocation7], %s270
        %s272 = smul.u32 8, %s23
        %p273 = scmp.lt.s32.totalorder %s23, 1
        %s274 = scalar_select %p273, %s23, 1
        %s275 = smul.addr %s274, 8
        %s276 = scalar_lea.vmem %s3, %s275
        %v277 = vld [vmem:[%s237] sm:$0xff]
        %v278 = vld [vmem:[%s237 + $0x8] sm:$0xff]
        %v279 = vld [vmem:[%s237 + $0x10] sm:$0xff]
        %v280 = vld [vmem:[%s237 + $0x18] sm:$0xff]
        %v281 = vld [vmem:[%s237 + $0x20] sm:$0xff]
        %v282 = vld [vmem:[%s237 + $0x28] sm:$0xff]
        %v283 = vld [vmem:[%s237 + $0x30] sm:$0xff]
        %v284 = vld [vmem:[%s237 + $0x38] sm:$0xff]
        %v285 = vld [vmem:[%s237 + $0x40] sm:$0xff]
        %v286 = vld [vmem:[%s237 + $0x48] sm:$0xff]
        %v287 = vld [vmem:[%s237 + $0x50] sm:$0xff]
        %v288 = vld [vmem:[%s237 + $0x58] sm:$0xff]
        %v289 = vld [vmem:[%s237 + $0x60] sm:$0xff]
        %v290 = vld [vmem:[%s237 + $0x68] sm:$0xff]
        %v291 = vld [vmem:[%s237 + $0x70] sm:$0xff]
        %v292 = vld [vmem:[%s237 + $0x78] sm:$0xff]
        %v293 = vld [vmem:[%s1] sm:$0xff]
        %v294 = vld [vmem:[%s1 + $0x8] sm:$0xff]
        %v295 = vld [vmem:[%s276] sm:$0xff]
        %v296 = vld [vmem:[%s4] sm:$0x1]
        %v297 = vmul.f32 %v277, %v293
        %v298 = vmul.f32 %v278, %v294
        %v299 = vmul.f32 %v279, %v293
        %v300 = vmul.f32 %v280, %v294
        %v301 = vmul.f32 %v281, %v293
        %v302 = vmul.f32 %v282, %v294
        %v303 = vmul.f32 %v283, %v293
        %v304 = vmul.f32 %v284, %v294
        %v305 = vmul.f32 %v285, %v293
        %v306 = vmul.f32 %v286, %v294
        %v307 = vmul.f32 %v287, %v293
        %v308 = vmul.f32 %v288, %v294
        %v309 = vmul.f32 %v289, %v293
        %v310 = vmul.f32 %v290, %v294
        %v311 = vmul.f32 %v291, %v293
        %v312 = vmul.f32 %v292, %v294
        %vm313 = vcmask 261120
        %v314 = vsel %vm313, %v297, 0.0
        %315 = vadd.xlane.f32.xlu0 %v314
        %v316 = vpop.xlane.xlu0 %315
        %v317 = vsel %vm313, %v298, 0.0
        %318 = vadd.xlane.f32.xlu0 %v317
        %v319 = vpop.xlane.xlu0 %318
        %v320 = vsel %vm313, %v299, 0.0
        %321 = vadd.xlane.f32.xlu0 %v320
        %v322 = vpop.xlane.xlu0 %321
        %v323 = vsel %vm313, %v300, 0.0
        %324 = vadd.xlane.f32.xlu0 %v323
        %v325 = vpop.xlane.xlu0 %324
        %v326 = vsel %vm313, %v301, 0.0
        %327 = vadd.xlane.f32.xlu0 %v326
        %v328 = vpop.xlane.xlu0 %327
        %v329 = vsel %vm313, %v302, 0.0
        %330 = vadd.xlane.f32.xlu0 %v329
        %v331 = vpop.xlane.xlu0 %330
        %v332 = vsel %vm313, %v303, 0.0
        %333 = vadd.xlane.f32.xlu0 %v332
        %v334 = vpop.xlane.xlu0 %333
        %v335 = vsel %vm313, %v304, 0.0
        %336 = vadd.xlane.f32.xlu0 %v335
        %v337 = vpop.xlane.xlu0 %336
        %v338 = vsel %vm313, %v305, 0.0
        %339 = vadd.xlane.f32.xlu0 %v338
        %v340 = vpop.xlane.xlu0 %339
        %v341 = vsel %vm313, %v306, 0.0
        %342 = vadd.xlane.f32.xlu0 %v341
        %v343 = vpop.xlane.xlu0 %342
        %v344 = vsel %vm313, %v307, 0.0
        %345 = vadd.xlane.f32.xlu0 %v344
        %v346 = vpop.xlane.xlu0 %345
        %v347 = vsel %vm313, %v308, 0.0
        %348 = vadd.xlane.f32.xlu0 %v347
        %v349 = vpop.xlane.xlu0 %348
        %v350 = vsel %vm313, %v309, 0.0
        %351 = vadd.xlane.f32.xlu0 %v350
        %v352 = vpop.xlane.xlu0 %351
        %v353 = vsel %vm313, %v310, 0.0
        %354 = vadd.xlane.f32.xlu0 %v353
        %v355 = vpop.xlane.xlu0 %354
        %v356 = vsel %vm313, %v311, 0.0
        %357 = vadd.xlane.f32.xlu0 %v356
        %v358 = vpop.xlane.xlu0 %357
        %v359 = vsel %vm313, %v312, 0.0
        %360 = vadd.xlane.f32.xlu0 %v359
        %v361 = vpop.xlane.xlu0 %360
        %362 = vset.pattern.permute.xlu0 0
        %363 = vperm.xlu0 %362, %v295
        %v364 = vpop.permute.xlu0 %363
        %v365 = vlaneseq
        %v366 = vshrl.u32 %v365, 7
        %v367 = vsub.s32 0, %v366
        %v368 = vrot.slane %v296, %v367
        %vm369 = vcmp.eq.s32.totalorder %v364, %v368
        %s370 = smul.u32 %s23, 8
        %v371 = vlaneseq
        %v372 = vshrl.u32 %v371, 7
        %v373 = vstv %s370
        %v374 = vadd.s32 %v373, %v372
        %v375 = vlaneseq
        %v376 = vand.u32 %v375, 127
        %vm377 = vcmp.eq.s32.totalorder %v374, %v376
        %v394 = vlaneseq
        %v395 = vshrl.u32 %v394, 7
        %v396 = vsub.s32 %v376, %v395
        %v397 = vrot.slane %v316, %v396
        %v398 = vadd.s32 %v376, 4294967288
        %v399 = vlaneseq
        %v400 = vshrl.u32 %v399, 7
        %v401 = vsub.s32 %v398, %v400
        %v402 = vrot.slane %v319, %v401
        %vm403 = vcmask 130112
        %v404 = vsel %vm403, %v402, %v397
        %v405 = vlaneseq
        %v406 = vshrl.u32 %v405, 7
        %v407 = vsub.s32 %v376, %v406
        %v408 = vrot.slane %v322, %v407
        %v409 = vlaneseq
        %v410 = vshrl.u32 %v409, 7
        %v411 = vsub.s32 %v398, %v410
        %v412 = vrot.slane %v325, %v411
        %v413 = vsel %vm403, %v412, %v408
        %v414 = vlaneseq
        %v415 = vshrl.u32 %v414, 7
        %v416 = vsub.s32 %v376, %v415
        %v417 = vrot.slane %v328, %v416
        %v418 = vlaneseq
        %v419 = vshrl.u32 %v418, 7
        %v420 = vsub.s32 %v398, %v419
        %v421 = vrot.slane %v331, %v420
        %v422 = vsel %vm403, %v421, %v417
        %v423 = vlaneseq
        %v424 = vshrl.u32 %v423, 7
        %v425 = vsub.s32 %v376, %v424
        %v426 = vrot.slane %v334, %v425
        %v427 = vlaneseq
        %v428 = vshrl.u32 %v427, 7
        %v429 = vsub.s32 %v398, %v428
        %v430 = vrot.slane %v337, %v429
        %v431 = vsel %vm403, %v430, %v426
        %v432 = vlaneseq
        %v433 = vshrl.u32 %v432, 7
        %v434 = vsub.s32 %v376, %v433
        %v435 = vrot.slane %v340, %v434
        %v436 = vlaneseq
        %v437 = vshrl.u32 %v436, 7
        %v438 = vsub.s32 %v398, %v437
        %v439 = vrot.slane %v343, %v438
        %v440 = vsel %vm403, %v439, %v435
        %v441 = vlaneseq
        %v442 = vshrl.u32 %v441, 7
        %v443 = vsub.s32 %v376, %v442
        %v444 = vrot.slane %v346, %v443
        %v445 = vlaneseq
        %v446 = vshrl.u32 %v445, 7
        %v447 = vsub.s32 %v398, %v446
        %v448 = vrot.slane %v349, %v447
        %v449 = vsel %vm403, %v448, %v444
        %v450 = vlaneseq
        %v451 = vshrl.u32 %v450, 7
        %v452 = vsub.s32 %v376, %v451
        %v453 = vrot.slane %v352, %v452
        %v454 = vlaneseq
        %v455 = vshrl.u32 %v454, 7
        %v456 = vsub.s32 %v398, %v455
        %v457 = vrot.slane %v355, %v456
        %v458 = vsel %vm403, %v457, %v453
        %v459 = vlaneseq
        %v460 = vshrl.u32 %v459, 7
        %v461 = vsub.s32 %v376, %v460
        %v462 = vrot.slane %v358, %v461
        %v463 = vlaneseq
        %v464 = vshrl.u32 %v463, 7
        %v465 = vsub.s32 %v398, %v464
        %v466 = vrot.slane %v361, %v465
        %v467 = vsel %vm403, %v466, %v462
        %vm468 = vcmask 1041409
        %v469 = vsel %vm468, %v413, %v404
        %vm470 = vcmask 1042434
        %v471 = vsel %vm470, %v422, %v469
        %vm472 = vcmask 1043459
        %v473 = vsel %vm472, %v431, %v471
        %vm474 = vcmask 1044484
        %v475 = vsel %vm474, %v440, %v473
        %vm476 = vcmask 1045509
        %v477 = vsel %vm476, %v449, %v475
        %vm478 = vcmask 1046534
        %v479 = vsel %vm478, %v458, %v477
        %vm480 = vcmask 1047559
        %v481 = vsel %vm480, %v467, %v479
        %v483 = vsel %vm369, %v481, -1e+30
        %v484 = vsel %vm377, -1000.0, %v483
        %vm485 = vcmask 130048
        %v486 = vsel %vm485, %v484, -inf
        %487 = vmax.xlane.f32.xlu0 %v486
        %v488 = vpop.xlane.xlu0 %487
        %v489 = vsub.f32 %v484, %v488
        %v490 = vmul.f32 %v489, 1.442695
        %v491 = vpow.pop %v490
        %v492 = vsel %vm485, %v491, 0.0
        %493 = vadd.xlane.f32.xlu0 %v492
        %v494 = vpop.xlane.xlu0 %493
        %v495 = vld [vmem:[#allocation5] sm:$0xff]
        %v496 = vld [vmem:[#allocation5 + $0x8] sm:$0xff]
        %v498 = vsel %vm485, %v491, 0
        %500 = vmatprep.subr.mxu0 0.0
        %501 = vmatpush1.msra.mxu0 0.0
        %502 = vmatprep.subr.mxu0 0.0
        %503 = vmatpush1.msra.mxu0 0.0
        %504 = vmatprep.subr.mxu0 0.0
        %505 = vmatpush1.msra.mxu0 0.0
        %506 = vmatprep.subr.mxu0 0.0
        %507 = vmatpush1.msra.mxu0 0.0
        %508 = vmatprep.subr.mxu0 0.0
        %509 = vmatpush1.msra.mxu0 0.0
        %510 = vmatprep.subr.mxu0 0.0
        %511 = vmatpush1.msra.mxu0 0.0
        %512 = vmatprep.subr.mxu0 0.0
        %513 = vmatpush1.msra.mxu0 0.0
        %514 = vmatprep.subr.mxu0 0.0
        %515 = vmatpush1.msra.mxu0 0.0
        %516 = vmatprep.subr.mxu0 0.0
        %517 = vmatpush1.msra.mxu0 0.0
        %518 = vmatprep.subr.mxu0 0.0
        %519 = vmatpush1.msra.mxu0 0.0
        %520 = vmatprep.subr.mxu0 0.0
        %521 = vmatpush1.msra.mxu0 0.0
        %522 = vmatprep.subr.mxu0 0.0
        %523 = vmatpush1.msra.mxu0 0.0
        %524 = vmatprep.subr.mxu0 0.0
        %525 = vmatpush1.msra.mxu0 0.0
        %526 = vmatprep.subr.mxu0 0.0
        %527 = vmatpush1.msra.mxu0 0.0
        %528 = vmatprep.subr.mxu0 0.0
        %529 = vmatpush1.msra.mxu0 %v496
        %530 = vmatprep.subr.mxu0 0.0
        %531 = vmatpush1.msra.mxu0 %v495
        %532 = vmatprep.subr.mxu0 0.0
        %533 = vmatpush2.msra.mxu0 0.0
        %534 = vmatprep.subr.mxu0 0.0
        %535 = vmatpush2.msra.mxu0 0.0
        %536 = vmatprep.subr.mxu0 0.0
        %537 = vmatpush2.msra.mxu0 0.0
        %538 = vmatprep.subr.mxu0 0.0
        %539 = vmatpush2.msra.mxu0 0.0
        %540 = vmatprep.subr.mxu0 0.0
        %541 = vmatpush2.msra.mxu0 0.0
        %542 = vmatprep.subr.mxu0 0.0
        %543 = vmatpush2.msra.mxu0 0.0
        %544 = vmatprep.subr.mxu0 0.0
        %545 = vmatpush2.msra.mxu0 0.0
        %546 = vmatprep.subr.mxu0 0.0
        %547 = vmatpush2.msra.mxu0 0.0
        %548 = vmatprep.subr.mxu0 0.0
        %549 = vmatpush2.msra.mxu0 0.0
        %550 = vmatprep.subr.mxu0 0.0
        %551 = vmatpush2.msra.mxu0 0.0
        %552 = vmatprep.subr.mxu0 0.0
        %553 = vmatpush2.msra.mxu0 0.0
        %554 = vmatprep.subr.mxu0 0.0
        %555 = vmatpush2.msra.mxu0 0.0
        %556 = vmatprep.subr.mxu0 0.0
        %557 = vmatpush2.msra.mxu0 0.0
        %558 = vmatprep.subr.mxu0 0.0
        %559 = vmatpush2.msra.mxu0 0.0
        %560 = vmatprep.subr.mxu0 0.0
        %561 = vmatpush2.msra.mxu0 0.0
        %562 = vmatprep.subr.mxu0 0.0
        %563 = vmatpush2.msra.mxu0 0.0
        %564 = vmatprep.mubr.f32.mxu0 0.0
        %565 = vmatmul.mubr.f32.gmra.mxu0 %v498
        %v566 = vpop.f32.mrf.mxu0
        %v567 = vadd.f32 0.0, %v566
        %v568 = vpop.f32.mrf.mxu0
        %569 = vdwg.mxu0
        %v570 = vrcp.pop %v494
        %v571 = vmul.f32 %v567, %v570
        %v572 = vsel %vm369, 1, 0
        %v573 = vcvt.s32.f32 %v572
        %v574 = vsel %vm485, %v573, 0.0
        %575 = vadd.xlane.f32.xlu0 %v574
        %v576 = vpop.xlane.xlu0 %575
        %vm577 = vcmp.lt.s32.totalorder %v374, 16
        %vm578 = vcmp.gt.f32.partialorder %v576, 1.0
        %vm579 = vmand %vm578, %vm577
        %v580 = vsel %vm579, 1, 0
        %vm581 = vcmp.eq.s32.totalorder %v580, 1
        %v582 = vsel %vm581, %v571, 0.0
        %583 = vst [vmem:[%s271] sm:$0xff] %v582
        %s584 = sand.u32 %s146, 1
        %s585 = scalar_lea.sflag [#allocation4], %s584
        %s586 = sand.u32 %s146, 1
        %s587 = smul.addr %s586, 8
        %s588 = scalar_lea.vmem [#allocation7], %s587
        // Predicated region
        $region49: #{tpu_custom_call.1} parent=39 // pred_check
          %p589 = pneg %p156
        $region50: #{tpu_custom_call.1} parent=39 // pred_check_branch
          %591 = sbr.rel (%p589) target = $region52
        $region51: #{tpu_custom_call.1} parent=39 // pred_region
          %s593 = ssub.s32 128, 128
          %594 = vsyncadd %s585, %s593
          %s595 = smul.addr %s23, 128
          %s596 = scalar_lea.hbm %s5, %s595
          %s598 = sshll.u32 %s588, 4
          %s599 = int_to_ptr.vmem [resolvable:$true] %s598
          %601 = dma.vmem_to_hbm [thread:$0]  %s599, 128, %s596, %s585
        $region52: #{tpu_custom_call.1} parent=39 // pred_fallthru
          _
      $region40: #{tpu_custom_call.1} parent=5 // pred_fallthru
        _
      %p602 = scmp.le.s32.totalorder 2, %s18
      // Predicated region
      $region53: #{tpu_custom_call.1} parent=5 // pred_check
        %p603 = pneg %p602
      $region54: #{tpu_custom_call.1} parent=5 // pred_check_branch
        %605 = sbr.rel (%p603) target = $region56
      $region55: #{tpu_custom_call.1} parent=5 // pred_region
        %s606 = ssub.s32 %s18, 2
        // Predicated region
        $region57: #{tpu_custom_call.1} parent=55 // pred_check
          %p607 = pneg %p162
        $region58: #{tpu_custom_call.1} parent=55 // pred_check_branch
          %609 = sbr.rel (%p607) target = $region60
        $region59: #{tpu_custom_call.1} parent=55 // pred_region
          %s610 = sand.u32 %s147, 1
          %s611 = scalar_lea.sflag [#allocation4], %s610
          %s612 = sand.u32 %s147, 1
          %s613 = smul.addr %s612, 8
          %s614 = scalar_lea.vmem [#allocation7], %s613
          %615 = dma.done %s611, 128
        $region60: #{tpu_custom_call.1} parent=55 // pred_fallthru
          _
      $region56: #{tpu_custom_call.1} parent=5 // pred_fallthru
        _
    $region6: #{tpu_custom_call.1} parent=1 // loop_footer
      %s22 = sadd.s32 1, %s18
    $region7: #{tpu_custom_call.1} parent=1 // loop_footer_branch
      %17 = sbr.rel target = $region3
    $region8: #{tpu_custom_call.1} parent=1 // loop_exit
      _
    %616 = vsyncpa [#allocation3], 1
    %s617 = scalar_lea.sflag [#allocation3], 1
    %618 = vsyncpa %s617, 1
    %619 = vsyncpa [#allocation6], 1
    %620 = vsyncpa [#allocation4], 1
    %s621 = scalar_lea.sflag [#allocation4], 1
    %622 = vsyncpa %s621, 1

</llo_original>
